<compile_context>
chip_gen: v7x
topology: tpu7x:2x2x1
jax: 0.10.0
libtpu: 0.0.40
codegen_flags: <defaults>
</compile_context>

<pallas_src>
import math
from functools import partial

import jax
import jax.numpy as jnp
from jax import lax
from jax.experimental import pallas as pl
from jax.experimental.pallas import tpu as pltpu

_VMEM_BUDGET = 14 * 1024 * 1024  # conservative across v5e / v6e / v7x


def _round_up(x, m):
    return -(-x // m) * m


def _choose_row_tile(ho, est_fn, budget=_VMEM_BUDGET):
    divs = [d for d in range(1, ho + 1) if ho % d == 0]
    cand = (sorted([d for d in divs if d % 8 == 0], reverse=True)
            + sorted([d for d in divs if d % 8 != 0], reverse=True))
    for d in cand:
        if est_fn(d) <= budget:
            return d
    return min(divs)


# ---------------------------------------------------------------------------
# Fused conv kernel: tap-loop matmuls + bias + activation + optional skip add
# and masked composite, all on a lane-dense flattened (rows*padded_width) tile.
# ---------------------------------------------------------------------------
def _conv_kernel(*refs, taps, cin, cout, lanes, act, has_halo, has_add,
                 has_comp):
    i = 0
    strip = refs[i][...]
    i += 1
    if has_halo:
        strip = jnp.concatenate([strip, refs[i][...]], axis=1)
        i += 1
    w_ref = refs[i]
    i += 1
    b_ref = refs[i]
    i += 1
    add_ref = None
    comp_ref = None
    if has_add:
        add_ref = refs[i]
        i += 1
    if has_comp:
        comp_ref = refs[i]
        i += 1
    o_ref = refs[i]

    acc = None
    for t, (c0, s) in enumerate(taps):
        win = strip[c0:c0 + cin, s:s + lanes]
        p = jnp.dot(w_ref[t], win, preferred_element_type=jnp.float32)
        acc = p if acc is None else acc + p
    acc = acc[:cout] + b_ref[...]
    if act == "lrelu":
        acc = jnp.where(acc >= 0, acc, 0.2 * acc)
    elif act == "tanh":
        acc = jnp.tanh(acc)
    if add_ref is not None:
        acc = acc + add_ref[...].astype(jnp.float32)
    if comp_ref is not None:
        x4 = comp_ref[...]
        msk = x4[3:4, :]
        acc = x4[0:3, :] * (1.0 - msk) + acc * msk
    o_ref[...] = acc.astype(o_ref.dtype)


def conv_layer(x, w, b, *, stride, act="linear", add=None, comp=None,
               out_dtype=jnp.bfloat16):
    """3x3 (stride 1/2, pad 1) or 1x1 conv as one fused Pallas kernel.

    x: (B, Cin, H, W); w: (Cout, Cin, k, k) bf16; b: (Cout,) f32.
    add:  optional (B, Cout, Ho, >=Wo) tensor added after the activation.
    comp: optional (B, 4, Ho, Wo) f32 tensor; output becomes
          comp[:, :3]*(1-mask) + act(conv)*mask with mask = comp[:, 3:4].
    Returns (B, Cout, Ho, Wo) in out_dtype.
    """
    B, Cin, H, W = x.shape
    Cout, cin_w, kh, kw = w.shape
    assert cin_w == Cin and kh == kw and kh in (1, 3)
    x = x.astype(jnp.bfloat16)

    if kh == 1:
        assert stride == 1
        Ho, Wo = H, W
        Cg, nat_rows, nat_w = Cin, H, W
        tap_geom = [(0, 0, 0)]  # (channel offset, row shift, col shift)
        has_halo = False
    elif stride == 1:
        Ho, Wo = H, W
        Cg, nat_rows, nat_w = Cin, H + 2, W + 2
        tap_geom = [(0, dh, dw) for dh in range(3) for dw in range(3)]
        has_halo = True
    else:
        assert stride == 2 and H % 2 == 0 and W % 2 == 0
        Ho, Wo = H // 2, W // 2
        Cg, nat_rows, nat_w = 4 * Cin, (H + 2) // 2, (W + 2) // 2
        tap_geom = [(((dh % 2) * 2 + (dw % 2)) * Cin, dh // 2, dw // 2)
                    for dh in range(3) for dw in range(3)]
        has_halo = True

    Coutp = _round_up(Cout, 8)
    out_b = jnp.dtype(out_dtype).itemsize
    cadd = 0 if add is None else add.shape[1]
    has_comp = comp is not None

    def est(th):
        hb = 8 if th % 8 == 0 else th
        l = th * nat_w
        tot = 2 * Cg * l * 2                       # main input (double-buffered)
        if has_halo:
            tot += 3 * Cg * hb * nat_w * 2         # halo blocks + strip concat
        tot += 2 * Cout * l * out_b                # output (double-buffered)
        if cadd:
            tot += 2 * cadd * l * 2
        if has_comp:
            tot += 2 * 4 * l * 4
        tot += Cg * l * 2 + 2 * Coutp * l * 4 + Cin * l * 2   # in-kernel temps
        return tot

    TH = _choose_row_tile(Ho, est)
    HB = 8 if TH % 8 == 0 else TH
    n = Ho // TH
    req = 128 // math.gcd(128, HB if has_halo else TH)
    Win = _round_up(nat_w, req)
    lanes = TH * Win
    taps = [(c0, r0 * Win + cc0) for (c0, r0, cc0) in tap_geom]
    if has_halo:
        assert max(s for _, s in taps) <= HB * Win, "halo too small for taps"

    rows_total = n * TH + (HB if has_halo else 0)

    # ---- input operand: zero-padded, (phase-packed,) flattened -------------
    if kh == 1:
        xp = jnp.pad(x, ((0, 0), (0, 0), (0, rows_total - H), (0, Win - W)))
    elif stride == 1:
        xp = jnp.pad(x, ((0, 0), (0, 0), (1, rows_total - H - 1),
                         (1, Win - W - 1)))
    else:
        xp = jnp.pad(x, ((0, 0), (0, 0), (1, 1), (1, 1)))
        Hp, Wp = H + 2, W + 2
        xp = xp.reshape(B, Cin, Hp // 2, 2, Wp // 2, 2)
        xp = xp.transpose(0, 3, 5, 1, 2, 4).reshape(B, Cg, Hp // 2, Wp // 2)
        xp = jnp.pad(xp, ((0, 0), (0, 0), (0, rows_total - Hp // 2),
                          (0, Win - Wp // 2)))
    xin = xp.reshape(B, Cg, rows_total * Win)

    # ---- weights / bias -----------------------------------------------------
    T = len(taps)
    if kh == 1:
        wt = w.reshape(1, Cout, Cin)
    else:
        wt = jnp.transpose(w, (2, 3, 0, 1)).reshape(9, Cout, Cin)
    if Coutp != Cout:
        wt = jnp.pad(wt, ((0, 0), (0, Coutp - Cout), (0, 0)))
    wt = wt.astype(jnp.bfloat16)
    bias = b.astype(jnp.float32).reshape(Cout, 1)

    # ---- specs / extra fused inputs -----------------------------------------
    in_specs = [pl.BlockSpec((None, Cg, lanes), lambda r, bb: (bb, 0, r))]
    if has_halo:
        step = TH // HB
        in_specs.append(pl.BlockSpec((None, Cg, HB * Win),
                                     lambda r, bb: (bb, 0, (r + 1) * step)))
    in_specs += [pl.BlockSpec((T, Coutp, Cin), lambda r, bb: (0, 0, 0)),
                 pl.BlockSpec((Cout, 1), lambda r, bb: (0, 0))]
    extras = []
    if add is not None:
        assert add.shape[0] == B and add.shape[2] == Ho and add.shape[3] >= Wo
        af = jnp.pad(add[:, :, :, :Wo].astype(jnp.bfloat16),
                     ((0, 0), (0, 0), (0, 0), (0, Win - Wo)))
        extras.append(af.reshape(B, cadd, Ho * Win))
        in_specs.append(pl.BlockSpec((None, cadd, lanes),
                                     lambda r, bb: (bb, 0, r)))
    if has_comp:
        assert comp.shape[0] == B and comp.shape[1] == 4
        assert comp.shape[2] == Ho and comp.shape[3] >= Wo
        cf = jnp.pad(comp[:, :, :, :Wo].astype(jnp.float32),
                     ((0, 0), (0, 0), (0, 0), (0, Win - Wo)))
        extras.append(cf.reshape(B, 4, Ho * Win))
        in_specs.append(pl.BlockSpec((None, 4, lanes),
                                     lambda r, bb: (bb, 0, r)))
    out_spec = pl.BlockSpec((None, Cout, lanes), lambda r, bb: (bb, 0, r))

    kern = partial(_conv_kernel, taps=tuple(taps), cin=Cin, cout=Cout,
                   lanes=lanes, act=act, has_halo=has_halo,
                   has_add=add is not None, has_comp=has_comp)

    cost = pl.CostEstimate(
        flops=2 * B * Ho * Win * Cout * Cin * T,
        transcendentals=(B * Ho * Win * Cout) if act == "tanh" else 0,
        bytes_accessed=int(xin.size * 2 + wt.size * 2 + bias.size * 4
                           + sum(e.size * e.dtype.itemsize for e in extras)
                           + B * Cout * Ho * Win * out_b))

    args = [xin] + ([xin] if has_halo else []) + [wt, bias] + extras
    out = pl.pallas_call(
        kern,
        out_shape=jax.ShapeDtypeStruct((B, Cout, Ho * Win), out_dtype),
        grid=(n, B),                 # spatial axis leads (megacore at B == 1)
        in_specs=in_specs,
        out_specs=out_spec,
        compiler_params=pltpu.CompilerParams(
            dimension_semantics=("parallel", "parallel")),
        cost_estimate=cost,
    )(*args)

    return out.reshape(B, Cout, Ho, Win)[:, :, :, :Wo]


# ---------------------------------------------------------------------------
# Synthetic Illustration2Vec / Generator (deterministic weights, no checkpoint)
# ---------------------------------------------------------------------------
def upsample2(x):
    # TODO(synk): fuse this 2x nearest upsample into the consuming conv.
    return jnp.repeat(jnp.repeat(x, 2, axis=2), 2, axis=3)


def init_params(key, features=16, f1_features=16):
    C, Cf = features, f1_features

    def conv_init(k, cout, cin, kh, kw):
        k1, k2 = jax.random.split(k)
        fan_in = cin * kh * kw
        w = jax.random.normal(k1, (cout, cin, kh, kw), jnp.float32) * (2.0 / fan_in) ** 0.5
        bb = jax.random.normal(k2, (cout,), jnp.float32) * 0.01
        return w.astype(jnp.bfloat16), bb

    keys = jax.random.split(key, 8)
    p = {}
    p["f1_w1"], p["f1_b1"] = conv_init(keys[0], Cf, 4, 3, 3)
    p["f1_w2"], p["f1_b2"] = conv_init(keys[1], Cf, Cf, 3, 3)
    p["g_e1_w"], p["g_e1_b"] = conv_init(keys[2], C, 4, 3, 3)
    p["g_e2_w"], p["g_e2_b"] = conv_init(keys[3], 2 * C, C, 3, 3)
    p["g_h_w"], p["g_h_b"] = conv_init(keys[4], 2 * C, 4, 1, 1)
    p["g_f_w"], p["g_f_b"] = conv_init(keys[5], 2 * C, Cf, 1, 1)
    p["g_d1_w"], p["g_d1_b"] = conv_init(keys[6], C, 2 * C, 3, 3)
    p["g_d2_w"], p["g_d2_b"] = conv_init(keys[7], 3, C, 3, 3)
    return p


def paintstorch2_forward(params, x, h):
    """x: (B, 4, H, W) sketch + hint mask (f32); h: (B, 4, H/4, W/4) hints."""
    xb = x.astype(jnp.bfloat16)
    hb = h.astype(jnp.bfloat16)
    # Illustration2Vec stand-in: x -> features at H/4.
    f1 = conv_layer(xb, params["f1_w1"], params["f1_b1"], stride=2, act="lrelu")
    f = conv_layer(f1, params["f1_w2"], params["f1_b2"], stride=2, act="lrelu")
    # Generator stand-in.
    e1 = conv_layer(xb, params["g_e1_w"], params["g_e1_b"], stride=2, act="lrelu")
    e2 = conv_layer(e1, params["g_e2_w"], params["g_e2_b"], stride=2, act="lrelu")
    hh = conv_layer(hb, params["g_h_w"], params["g_h_b"], stride=1, act="lrelu")
    ff = conv_layer(f, params["g_f_w"], params["g_f_b"], stride=1, act="lrelu")
    m = (e2.astype(jnp.float32) + hh.astype(jnp.float32)
         + ff.astype(jnp.float32)).astype(jnp.bfloat16)
    # (d1 + e1) skip add fused into the conv epilogue.
    d1e = conv_layer(upsample2(m), params["g_d1_w"], params["g_d1_b"],
                     stride=1, act="lrelu", add=e1)
    # tanh conv + masked composite fused: rgb*(1-mask) + y*mask.
    out = conv_layer(upsample2(d1e), params["g_d2_w"], params["g_d2_b"],
                     stride=1, act="tanh", comp=x, out_dtype=jnp.float32)
    return out


# ---------------------------------------------------------------------------
# Pure-JAX reference (matches the Pallas pipeline's bf16 rounding points).
# ---------------------------------------------------------------------------
def _ref_forward(params, x, h):
    f32 = jnp.float32

    def bf(v):
        return v.astype(jnp.bfloat16).astype(f32)

    def conv(v, wn, bn, s, pad, act):
        y = lax.conv_general_dilated(bf(v), params[wn].astype(f32), (s, s),
                                     [(pad, pad), (pad, pad)],
                                     precision=lax.Precision.HIGHEST)
        y = y + params[bn].astype(f32).reshape(1, -1, 1, 1)
        if act == "lrelu":
            y = jnp.where(y >= 0, y, 0.2 * y)
        elif act == "tanh":
            y = jnp.tanh(y)
        return y

    def up(v):
        return jnp.repeat(jnp.repeat(v, 2, axis=2), 2, axis=3)

    f1 = bf(conv(x, "f1_w1", "f1_b1", 2, 1, "lrelu"))
    f = bf(conv(f1, "f1_w2", "f1_b2", 2, 1, "lrelu"))
    e1 = bf(conv(x, "g_e1_w", "g_e1_b", 2, 1, "lrelu"))
    e2 = bf(conv(e1, "g_e2_w", "g_e2_b", 2, 1, "lrelu"))
    hh = bf(conv(h, "g_h_w", "g_h_b", 1, 0, "lrelu"))
    ff = bf(conv(f, "g_f_w", "g_f_b", 1, 0, "lrelu"))
    m = bf(e2 + hh + ff)
    d1e = bf(conv(up(m), "g_d1_w", "g_d1_b", 1, 1, "lrelu") + e1)
    y = conv(up(d1e), "g_d2_w", "g_d2_b", 1, 1, "tanh")
    mask = x[:, 3:4]
    return x[:, :3] * (1.0 - mask) + y * mask


# ---------------------------------------------------------------------------
if __name__ == "__main__":
    key = jax.random.PRNGKey(0)
    k_param, k_x, k_m, k_h = jax.random.split(key, 4)

    B, H, W = 2, 16, 16
    params = init_params(k_param, features=16, f1_features=16)

    x_rgb = jax.random.uniform(k_x, (B, 3, H, W), jnp.float32, -1.0, 1.0)
    mask = (jax.random.uniform(k_m, (B, 1, H, W), jnp.float32) > 0.5).astype(jnp.float32)
    x = jnp.concatenate([x_rgb, mask], axis=1)                  # (2, 4, 16, 16)
    h = jax.random.uniform(k_h, (B, 4, H // 4, W // 4), jnp.float32, -1.0, 1.0)

    # Layer-level checks of the fused conv against lax.conv (stride 2 and 1).
    def ref_conv(v, wgt, bias, s, pad):
        y = lax.conv_general_dilated(v.astype(jnp.float32),
                                     wgt.astype(jnp.float32), (s, s),
                                     [(pad, pad), (pad, pad)],
                                     precision=lax.Precision.HIGHEST)
        return y + bias.reshape(1, -1, 1, 1)

    xb = x.astype(jnp.bfloat16).astype(jnp.float32)
    got = conv_layer(x, params["g_e1_w"], params["g_e1_b"], stride=2,
                     act="linear", out_dtype=jnp.float32)
    want = ref_conv(xb, params["g_e1_w"], params["g_e1_b"], 2, 1)
    assert bool(jnp.allclose(got, want, atol=2e-2, rtol=2e-2)), "stride-2 conv mismatch"

    t1 = jax.random.uniform(jax.random.PRNGKey(7), (B, 32, 8, 8),
                            jnp.float32, -1.0, 1.0)
    got = conv_layer(t1, params["g_d1_w"], params["g_d1_b"], stride=1,
                     act="linear", out_dtype=jnp.float32)
    want = ref_conv(t1.astype(jnp.bfloat16).astype(jnp.float32),
                    params["g_d1_w"], params["g_d1_b"], 1, 1)
    assert bool(jnp.allclose(got, want, atol=2e-2, rtol=2e-2)), "stride-1 conv mismatch"

    fwd = jax.jit(paintstorch2_forward)
    out = jax.block_until_ready(fwd(params, x, h))

    ref = _ref_forward(params, x, h)
    assert out.shape == (B, 3, H, W)
    assert bool(jnp.all(jnp.isfinite(out)))
    assert bool(jnp.allclose(out, ref, atol=2e-2, rtol=2e-2)), "forward mismatch"
    print("KERNEL_OK")
</pallas_src>

<mosaic_0001>
module attributes {stable_mosaic.version = 11 : i64} {
  func.func @_conv_kernel(%arg0: i32, %arg1: i32, %arg2: memref<1x16x128xbf16, #tpu.memory_space<vmem>>, %arg3: memref<1x16x128xbf16, #tpu.memory_space<vmem>>, %arg4: memref<9x16x4xbf16, #tpu.memory_space<vmem>>, %arg5: memref<16x1xf32, #tpu.memory_space<vmem>>, %arg6: memref<1x16x128xf32, #tpu.memory_space<vmem>>) attributes {dimension_semantics = [#tpu.dimension_semantics<parallel>, #tpu.dimension_semantics<parallel>], iteration_bounds = array<i64: 1, 2>, scalar_prefetch = 0 : i64, scratch_operands = 0 : i64, tpu.core_type = #tpu.core_type<tc>, window_params = [{transform_indices = @transform_0, window_bounds = array<i64: 1, 16, 128>}, {transform_indices = @transform_1, window_bounds = array<i64: 1, 16, 128>}, {pipeline_mode = #tpu.pipeline_mode<synchronous>, transform_indices = @transform_2, window_bounds = array<i64: 9, 16, 4>}, {pipeline_mode = #tpu.pipeline_mode<synchronous>, transform_indices = @transform_3, window_bounds = array<i64: 16, 1>}, {transform_indices = @transform_4, window_bounds = array<i64: 1, 16, 128>}]} {
    %c0 = arith.constant 0 : index
    %c0_0 = arith.constant 0 : index
    %c0_1 = arith.constant 0 : index
    %0 = vector.load %arg2[%c0, %c0_0, %c0_1] : memref<1x16x128xbf16, #tpu.memory_space<vmem>>, vector<1x16x128xbf16>
    %1 = vector.shape_cast %0 : vector<1x16x128xbf16> to vector<16x128xbf16>
    %c0_2 = arith.constant 0 : index
    %c0_3 = arith.constant 0 : index
    %c0_4 = arith.constant 0 : index
    %2 = vector.load %arg3[%c0_2, %c0_3, %c0_4] : memref<1x16x128xbf16, #tpu.memory_space<vmem>>, vector<1x16x128xbf16>
    %3 = vector.shape_cast %2 : vector<1x16x128xbf16> to vector<16x128xbf16>
    %4 = tpu.concatenate %1, %3 in 1 : vector<16x128xbf16>, vector<16x128xbf16> -> vector<16x256xbf16>
    %5 = vector.extract_strided_slice %4 {offsets = [0, 0], sizes = [4, 128], strides = [1, 1]} : vector<16x256xbf16> to vector<4x128xbf16>
    %c0_5 = arith.constant 0 : index
    %c0_6 = arith.constant 0 : index
    %c0_7 = arith.constant 0 : index
    %6 = vector.load %arg4[%c0_5, %c0_6, %c0_7] : memref<9x16x4xbf16, #tpu.memory_space<vmem>>, vector<1x16x4xbf16>
    %7 = vector.shape_cast %6 : vector<1x16x4xbf16> to vector<16x4xbf16>
    %cst = arith.constant dense<0.000000e+00> : vector<16x128xf32>
    %8 = tpu.matmul %7, %5, %cst {dimension_numbers = #tpu.dot_dimension_numbers<[1], [0], [0], [1], [0, 0, 1, 1], [], []>} : vector<16x4xbf16>, vector<4x128xbf16>, vector<16x128xf32> -> vector<16x128xf32>
    %9 = vector.extract_strided_slice %4 {offsets = [4, 0], sizes = [4, 128], strides = [1, 1]} : vector<16x256xbf16> to vector<4x128xbf16>
    %c1 = arith.constant 1 : index
    %c0_8 = arith.constant 0 : index
    %c0_9 = arith.constant 0 : index
    %10 = vector.load %arg4[%c1, %c0_8, %c0_9] : memref<9x16x4xbf16, #tpu.memory_space<vmem>>, vector<1x16x4xbf16>
    %11 = vector.shape_cast %10 : vector<1x16x4xbf16> to vector<16x4xbf16>
    %cst_10 = arith.constant dense<0.000000e+00> : vector<16x128xf32>
    %12 = tpu.matmul %11, %9, %cst_10 {dimension_numbers = #tpu.dot_dimension_numbers<[1], [0], [0], [1], [0, 0, 1, 1], [], []>} : vector<16x4xbf16>, vector<4x128xbf16>, vector<16x128xf32> -> vector<16x128xf32>
    %13 = arith.addf %8, %12 : vector<16x128xf32>
    %14 = vector.extract_strided_slice %4 {offsets = [0, 1], sizes = [4, 128], strides = [1, 1]} : vector<16x256xbf16> to vector<4x128xbf16>
    %c2 = arith.constant 2 : index
    %c0_11 = arith.constant 0 : index
    %c0_12 = arith.constant 0 : index
    %15 = vector.load %arg4[%c2, %c0_11, %c0_12] : memref<9x16x4xbf16, #tpu.memory_space<vmem>>, vector<1x16x4xbf16>
    %16 = vector.shape_cast %15 : vector<1x16x4xbf16> to vector<16x4xbf16>
    %cst_13 = arith.constant dense<0.000000e+00> : vector<16x128xf32>
    %17 = tpu.matmul %16, %14, %cst_13 {dimension_numbers = #tpu.dot_dimension_numbers<[1], [0], [0], [1], [0, 0, 1, 1], [], []>} : vector<16x4xbf16>, vector<4x128xbf16>, vector<16x128xf32> -> vector<16x128xf32>
    %18 = arith.addf %13, %17 : vector<16x128xf32>
    %19 = vector.extract_strided_slice %4 {offsets = [8, 0], sizes = [4, 128], strides = [1, 1]} : vector<16x256xbf16> to vector<4x128xbf16>
    %c3 = arith.constant 3 : index
    %c0_14 = arith.constant 0 : index
    %c0_15 = arith.constant 0 : index
    %20 = vector.load %arg4[%c3, %c0_14, %c0_15] : memref<9x16x4xbf16, #tpu.memory_space<vmem>>, vector<1x16x4xbf16>
    %21 = vector.shape_cast %20 : vector<1x16x4xbf16> to vector<16x4xbf16>
    %cst_16 = arith.constant dense<0.000000e+00> : vector<16x128xf32>
    %22 = tpu.matmul %21, %19, %cst_16 {dimension_numbers = #tpu.dot_dimension_numbers<[1], [0], [0], [1], [0, 0, 1, 1], [], []>} : vector<16x4xbf16>, vector<4x128xbf16>, vector<16x128xf32> -> vector<16x128xf32>
    %23 = arith.addf %18, %22 : vector<16x128xf32>
    %24 = vector.extract_strided_slice %4 {offsets = [12, 0], sizes = [4, 128], strides = [1, 1]} : vector<16x256xbf16> to vector<4x128xbf16>
    %c4 = arith.constant 4 : index
    %c0_17 = arith.constant 0 : index
    %c0_18 = arith.constant 0 : index
    %25 = vector.load %arg4[%c4, %c0_17, %c0_18] : memref<9x16x4xbf16, #tpu.memory_space<vmem>>, vector<1x16x4xbf16>
    %26 = vector.shape_cast %25 : vector<1x16x4xbf16> to vector<16x4xbf16>
    %cst_19 = arith.constant dense<0.000000e+00> : vector<16x128xf32>
    %27 = tpu.matmul %26, %24, %cst_19 {dimension_numbers = #tpu.dot_dimension_numbers<[1], [0], [0], [1], [0, 0, 1, 1], [], []>} : vector<16x4xbf16>, vector<4x128xbf16>, vector<16x128xf32> -> vector<16x128xf32>
    %28 = arith.addf %23, %27 : vector<16x128xf32>
    %29 = vector.extract_strided_slice %4 {offsets = [8, 1], sizes = [4, 128], strides = [1, 1]} : vector<16x256xbf16> to vector<4x128xbf16>
    %c5 = arith.constant 5 : index
    %c0_20 = arith.constant 0 : index
    %c0_21 = arith.constant 0 : index
    %30 = vector.load %arg4[%c5, %c0_20, %c0_21] : memref<9x16x4xbf16, #tpu.memory_space<vmem>>, vector<1x16x4xbf16>
    %31 = vector.shape_cast %30 : vector<1x16x4xbf16> to vector<16x4xbf16>
    %cst_22 = arith.constant dense<0.000000e+00> : vector<16x128xf32>
    %32 = tpu.matmul %31, %29, %cst_22 {dimension_numbers = #tpu.dot_dimension_numbers<[1], [0], [0], [1], [0, 0, 1, 1], [], []>} : vector<16x4xbf16>, vector<4x128xbf16>, vector<16x128xf32> -> vector<16x128xf32>
    %33 = arith.addf %28, %32 : vector<16x128xf32>
    %34 = vector.extract_strided_slice %4 {offsets = [0, 16], sizes = [4, 128], strides = [1, 1]} : vector<16x256xbf16> to vector<4x128xbf16>
    %c6 = arith.constant 6 : index
    %c0_23 = arith.constant 0 : index
    %c0_24 = arith.constant 0 : index
    %35 = vector.load %arg4[%c6, %c0_23, %c0_24] : memref<9x16x4xbf16, #tpu.memory_space<vmem>>, vector<1x16x4xbf16>
    %36 = vector.shape_cast %35 : vector<1x16x4xbf16> to vector<16x4xbf16>
    %cst_25 = arith.constant dense<0.000000e+00> : vector<16x128xf32>
    %37 = tpu.matmul %36, %34, %cst_25 {dimension_numbers = #tpu.dot_dimension_numbers<[1], [0], [0], [1], [0, 0, 1, 1], [], []>} : vector<16x4xbf16>, vector<4x128xbf16>, vector<16x128xf32> -> vector<16x128xf32>
    %38 = arith.addf %33, %37 : vector<16x128xf32>
    %39 = vector.extract_strided_slice %4 {offsets = [4, 16], sizes = [4, 128], strides = [1, 1]} : vector<16x256xbf16> to vector<4x128xbf16>
    %c7 = arith.constant 7 : index
    %c0_26 = arith.constant 0 : index
    %c0_27 = arith.constant 0 : index
    %40 = vector.load %arg4[%c7, %c0_26, %c0_27] : memref<9x16x4xbf16, #tpu.memory_space<vmem>>, vector<1x16x4xbf16>
    %41 = vector.shape_cast %40 : vector<1x16x4xbf16> to vector<16x4xbf16>
    %cst_28 = arith.constant dense<0.000000e+00> : vector<16x128xf32>
    %42 = tpu.matmul %41, %39, %cst_28 {dimension_numbers = #tpu.dot_dimension_numbers<[1], [0], [0], [1], [0, 0, 1, 1], [], []>} : vector<16x4xbf16>, vector<4x128xbf16>, vector<16x128xf32> -> vector<16x128xf32>
    %43 = arith.addf %38, %42 : vector<16x128xf32>
    %44 = vector.extract_strided_slice %4 {offsets = [0, 17], sizes = [4, 128], strides = [1, 1]} : vector<16x256xbf16> to vector<4x128xbf16>
    %c8 = arith.constant 8 : index
    %c0_29 = arith.constant 0 : index
    %c0_30 = arith.constant 0 : index
    %45 = vector.load %arg4[%c8, %c0_29, %c0_30] : memref<9x16x4xbf16, #tpu.memory_space<vmem>>, vector<1x16x4xbf16>
    %46 = vector.shape_cast %45 : vector<1x16x4xbf16> to vector<16x4xbf16>
    %cst_31 = arith.constant dense<0.000000e+00> : vector<16x128xf32>
    %47 = tpu.matmul %46, %44, %cst_31 {dimension_numbers = #tpu.dot_dimension_numbers<[1], [0], [0], [1], [0, 0, 1, 1], [], []>} : vector<16x4xbf16>, vector<4x128xbf16>, vector<16x128xf32> -> vector<16x128xf32>
    %48 = arith.addf %43, %47 : vector<16x128xf32>
    %c0_32 = arith.constant 0 : index
    %c0_33 = arith.constant 0 : index
    %49 = vector.load %arg5[%c0_32, %c0_33] : memref<16x1xf32, #tpu.memory_space<vmem>>, vector<16x1xf32>
    %50 = vector.broadcast %49 : vector<16x1xf32> to vector<16x128xf32>
    %51 = arith.addf %48, %50 : vector<16x128xf32>
    %c0_34 = arith.constant 0 : index
    %c0_35 = arith.constant 0 : index
    %c0_36 = arith.constant 0 : index
    %52 = vector.load %arg6[%c0_34, %c0_35, %c0_36] : memref<1x16x128xf32, #tpu.memory_space<vmem>>, vector<1x16x128xf32>
    %53 = vector.shape_cast %52 : vector<1x16x128xf32> to vector<16x128xf32>
    %54 = vector.shape_cast %51 : vector<16x128xf32> to vector<1x16x128xf32>
    tpu.vector_store %arg6[%c0_34, %c0_35, %c0_36], %54 {strides = array<i32>} : memref<1x16x128xf32, #tpu.memory_space<vmem>>, vector<1x16x128xf32>,
    return
  }
  func.func @transform_0(%arg0: i32, %arg1: i32) -> (i32, i32, i32) {
    %c0_i32 = arith.constant 0 : i32
    %c0_i32_0 = arith.constant 0 : i32
    return %arg1, %c0_i32, %arg0 : i32, i32, i32
  }
  func.func @transform_1(%arg0: i32, %arg1: i32) -> (i32, i32, i32) {
    %c1_i32 = arith.constant 1 : i32
    %0 = arith.addi %arg0, %c1_i32 : i32
    %c1_i32_0 = arith.constant 1 : i32
    %1 = arith.muli %0, %c1_i32_0 : i32
    %c0_i32 = arith.constant 0 : i32
    %c0_i32_1 = arith.constant 0 : i32
    return %arg1, %c0_i32, %1 : i32, i32, i32
  }
  func.func @transform_2(%arg0: i32, %arg1: i32) -> (i32, i32, i32) {
    %c0_i32 = arith.constant 0 : i32
    %c0_i32_0 = arith.constant 0 : i32
    %c0_i32_1 = arith.constant 0 : i32
    %c0_i32_2 = arith.constant 0 : i32
    return %c0_i32, %c0_i32_0, %c0_i32_1 : i32, i32, i32
  }
  func.func @transform_3(%arg0: i32, %arg1: i32) -> (i32, i32) {
    %c0_i32 = arith.constant 0 : i32
    %c0_i32_0 = arith.constant 0 : i32
    %c0_i32_1 = arith.constant 0 : i32
    return %c0_i32, %c0_i32_0 : i32, i32
  }
  func.func @transform_4(%arg0: i32, %arg1: i32) -> (i32, i32, i32) {
    %c0_i32 = arith.constant 0 : i32
    %c0_i32_0 = arith.constant 0 : i32
    return %arg1, %c0_i32, %arg0 : i32, i32, i32
  }
}

</mosaic_0001>

<llo_original>
// kernel: tpu_custom_call.1
$region0: #{tpu_custom_call.1}
  #allocation0 [shape = 'u32[]', space=smem, size = 0x4, offset = 0x4, fixed_abs, tag = 'smem constant byte address 0x4 - core index']
  #allocation1 [shape = 'u32[144,128]{1,0:T(1,128)}', space=vmem, size = 0x12000, scoped, tag = 'internal scratch']
  %s0 = inlined_call_operand.vmem [shape: bf16[2,16,256], index: 0, kind: input, shape index: {}]
  %s1 = inlined_call_operand.vmem [shape: bf16[2,16,256], index: 1, kind: input, shape index: {}]
  %s2 = inlined_call_operand.vmem [shape: bf16[9,16,4], index: 2, kind: input, shape index: {}]
  %s3 = inlined_call_operand.vmem [shape: f32[16,1], index: 3, kind: input, shape index: {}]
  %s4 = inlined_call_operand.hbm [shape: f32[2,16,128], index: 4, kind: output, shape index: {}]
  %s5 = sld [smem:[#allocation0]]
  $region131: #{tpu_custom_call.1} parent=0
    _
  %s7 = ssub.s32 1, %s5
  %s8 = scalar_select 0, %s7, %s5
  $region1: #{tpu_custom_call.1} parent=0
    #allocation2 [shape = 'u8[8192]{0}', space=vmem, size = 0x2000, scoped, tag = 'input window, operand 0']
    #allocation3 [shape = 'u8[8192]{0}', space=vmem, size = 0x2000, scoped, tag = 'input window, operand 1']
    #allocation4 [shape = 'u8[16384]{0}', space=vmem, size = 0x4000, scoped, tag = 'output window, operand 0']
    #allocation5 [shape = 's32[2]{0}', space=sflag, size = 0x8, scoped, tag = 'scoped memory for tpu_custom_call.1']
    %9 = vsyncpa [#allocation5], 0
    %s10 = scalar_lea.sflag [#allocation5], 1
    %11 = vsyncpa %s10, 0
    loop: start=0, step=1, limit=4
    $region2: #{tpu_custom_call.1} parent=1 // loop_pre_header
      _
    $region3: #{tpu_custom_call.1} parent=1 // loop_header
      %s13 = sphi 0, %s17
      %p14 = scmp.ge.s32.totalorder %s13, 4
      %s20 = sphi 0, %s32
      %s21 = sphi 0, %s28
      %s22 = sphi 0, %s20
      %s23 = sphi 0, %s21
      %s24 = sphi 0, %s22
      %s25 = sphi 0, %s23
      %s37 = sphi 0, %s39
      %s40 = sphi 0, %s37
      %s41 = sphi 0, %s40
      %s57 = sphi 0, %s41
      %s67 = sphi 0, %s69
      %s70 = sphi 0, %s67
      %s71 = sphi 0, %s70
      %s87 = sphi 0, %s71
      %s91 = sphi 0, %s91
      %s93 = sphi 0, %s91
      %s94 = sphi 0, %s93
      %s108 = sphi 0, %s94
      %s112 = sphi 0, %s112
      %s114 = sphi 0, %s112
      %s115 = sphi 0, %s114
      %s129 = sphi 0, %s115
      %s137 = sphi 0, %s139
      %s140 = sphi 0, %s137
      %s141 = sphi 0, %s140
      %s157 = sphi 0, %s141
    $region4: #{tpu_custom_call.1} parent=1 // loop_header_branch
      %16 = sbr.rel (%p14) target = $region8
    $region5: #{tpu_custom_call.1} parent=1 // loop_body
      %s18 = ssub.s32 %s13, 1
      %s19 = ssub.s32 %s13, 2
      %s26 = sadd.s32 1, %s21
      %p27 = scmp.ge.s32.totalorder %s26, 2
      %s28 = scalar_select %p27, 0, %s26
      %s29 = sadd.s32 1, %s20
      %s30 = scalar_select %p27, %s29, %s20
      %p31 = scmp.ge.s32.totalorder %s30, 1
      %s32 = scalar_select %p31, 0, %s30
      %s33 = ssub.s32 %s21, %s28
      %s34 = ssub.s32 %s20, %s32
      %s35 = sor.u32 %s33, %s34
      %p36 = scmp.eq.s32.totalorder %s35, 0
      %s38 = sadd.s32 %s37, 1
      %s39 = scalar_select %p36, %s37, %s38
      %p42 = pneg %p36
      %p43 = scmp.eq.s32.totalorder %s13, 1
      %p44 = por %p42, %p43
      %p45 = scmp.ne.s32.totalorder %s37, %s40
      %p46 = scmp.eq.s32.totalorder %s13, 0
      %p47 = por %p45, %p46
      %p48 = scmp.ne.s32.totalorder %s37, %s40
      %p49 = scmp.eq.s32.totalorder %s18, 1
      %p50 = por %p48, %p49
      %p51 = scmp.ne.s32.totalorder %s40, %s41
      %p52 = scmp.eq.s32.totalorder %s18, 0
      %p53 = por %p51, %p52
      %p54 = scmp.ne.s32.totalorder %s40, %s41
      %p55 = scmp.eq.s32.totalorder %s19, 1
      %p56 = por %p54, %p55
      %p58 = scmp.ne.s32.totalorder %s41, %s57
      %p59 = scmp.eq.s32.totalorder %s19, 0
      %p60 = por %p58, %p59
      %s61 = sadd.s32 %s20, 1
      %s62 = sadd.s32 %s32, 1
      %s63 = ssub.s32 %s21, %s28
      %s64 = ssub.s32 %s61, %s62
      %s65 = sor.u32 %s63, %s64
      %p66 = scmp.eq.s32.totalorder %s65, 0
      %s68 = sadd.s32 %s67, 1
      %s69 = scalar_select %p66, %s67, %s68
      %p72 = pneg %p66
      %p73 = scmp.eq.s32.totalorder %s13, 1
      %p74 = por %p72, %p73
      %p75 = scmp.ne.s32.totalorder %s67, %s70
      %p76 = scmp.eq.s32.totalorder %s13, 0
      %p77 = por %p75, %p76
      %p78 = scmp.ne.s32.totalorder %s67, %s70
      %p79 = scmp.eq.s32.totalorder %s18, 1
      %p80 = por %p78, %p79
      %p81 = scmp.ne.s32.totalorder %s70, %s71
      %p82 = scmp.eq.s32.totalorder %s18, 0
      %p83 = por %p81, %p82
      %p84 = scmp.ne.s32.totalorder %s70, %s71
      %p85 = scmp.eq.s32.totalorder %s19, 1
      %p86 = por %p84, %p85
      %p88 = scmp.ne.s32.totalorder %s71, %s87
      %p89 = scmp.eq.s32.totalorder %s19, 0
      %p90 = por %p88, %p89
      %s92 = sadd.s32 %s91, 1
      %p95 = scmp.eq.s32.totalorder %s13, 1
      %p96 = scmp.ne.s32.totalorder %s91, %s93
      %p97 = scmp.eq.s32.totalorder %s13, 0
      %p98 = por %p96, %p97
      %p99 = scmp.ne.s32.totalorder %s91, %s93
      %p100 = scmp.eq.s32.totalorder %s18, 1
      %p101 = por %p99, %p100
      %p102 = scmp.ne.s32.totalorder %s93, %s94
      %p103 = scmp.eq.s32.totalorder %s18, 0
      %p104 = por %p102, %p103
      %p105 = scmp.ne.s32.totalorder %s93, %s94
      %p106 = scmp.eq.s32.totalorder %s19, 1
      %p107 = por %p105, %p106
      %p109 = scmp.ne.s32.totalorder %s94, %s108
      %p110 = scmp.eq.s32.totalorder %s19, 0
      %p111 = por %p109, %p110
      %s113 = sadd.s32 %s112, 1
      %p116 = scmp.eq.s32.totalorder %s13, 1
      %p117 = scmp.ne.s32.totalorder %s112, %s114
      %p118 = scmp.eq.s32.totalorder %s13, 0
      %p119 = por %p117, %p118
      %p120 = scmp.ne.s32.totalorder %s112, %s114
      %p121 = scmp.eq.s32.totalorder %s18, 1
      %p122 = por %p120, %p121
      %p123 = scmp.ne.s32.totalorder %s114, %s115
      %p124 = scmp.eq.s32.totalorder %s18, 0
      %p125 = por %p123, %p124
      %p126 = scmp.ne.s32.totalorder %s114, %s115
      %p127 = scmp.eq.s32.totalorder %s19, 1
      %p128 = por %p126, %p127
      %p130 = scmp.ne.s32.totalorder %s115, %s129
      %p131 = scmp.eq.s32.totalorder %s19, 0
      %p132 = por %p130, %p131
      %s133 = ssub.s32 %s21, %s28
      %s134 = ssub.s32 %s20, %s32
      %s135 = sor.u32 %s133, %s134
      %p136 = scmp.eq.s32.totalorder %s135, 0
      %s138 = sadd.s32 %s137, 1
      %s139 = scalar_select %p136, %s137, %s138
      %p142 = pneg %p136
      %p143 = scmp.eq.s32.totalorder %s13, 1
      %p144 = por %p142, %p143
      %p145 = scmp.ne.s32.totalorder %s137, %s140
      %p146 = scmp.eq.s32.totalorder %s13, 0
      %p147 = por %p145, %p146
      %p148 = scmp.ne.s32.totalorder %s137, %s140
      %p149 = scmp.eq.s32.totalorder %s18, 1
      %p150 = por %p148, %p149
      %p151 = scmp.ne.s32.totalorder %s140, %s141
      %p152 = scmp.eq.s32.totalorder %s18, 0
      %p153 = por %p151, %p152
      %p154 = scmp.ne.s32.totalorder %s140, %s141
      %p155 = scmp.eq.s32.totalorder %s19, 1
      %p156 = por %p154, %p155
      %p158 = scmp.ne.s32.totalorder %s141, %s157
      %p159 = scmp.eq.s32.totalorder %s19, 0
      %p160 = por %p158, %p159
      %p161 = scmp.le.s32.totalorder 1, %s13
      %p162 = scmp.lt.s32.totalorder %s13, 3
      %p163 = pnand %p161, %p162
      %p164 = pneg %p163
      // Predicated region
      $region9: #{tpu_custom_call.1} parent=5 // pred_check
        _
      $region10: #{tpu_custom_call.1} parent=5 // pred_check_branch
        %166 = sbr.rel (%p163) target = $region12
      $region11: #{tpu_custom_call.1} parent=5 // pred_region
        %s167 = ssub.s32 %s13, 1
        // Predicated region
        $region13: #{tpu_custom_call.1} parent=11 // pred_check
          %p168 = pneg %p104
        $region14: #{tpu_custom_call.1} parent=11 // pred_check_branch
          %170 = sbr.rel (%p168) target = $region16
        $region15: #{tpu_custom_call.1} parent=11 // pred_region
          _
        $region16: #{tpu_custom_call.1} parent=11 // pred_fallthru
          _
        // Predicated region
        $region17: #{tpu_custom_call.1} parent=11 // pred_check
          %p171 = pneg %p125
        $region18: #{tpu_custom_call.1} parent=11 // pred_check_branch
          %173 = sbr.rel (%p171) target = $region20
        $region19: #{tpu_custom_call.1} parent=11 // pred_region
          _
        $region20: #{tpu_custom_call.1} parent=11 // pred_fallthru
          _
      $region12: #{tpu_custom_call.1} parent=5 // pred_fallthru
        _
      %p174 = scmp.lt.s32.totalorder %s13, 2
      // Predicated region
      $region21: #{tpu_custom_call.1} parent=5 // pred_check
        %p175 = pneg %p174
      $region22: #{tpu_custom_call.1} parent=5 // pred_check_branch
        %177 = sbr.rel (%p175) target = $region24
      $region23: #{tpu_custom_call.1} parent=5 // pred_region
        // Predicated region
        $region25: #{tpu_custom_call.1} parent=23 // pred_check
          %p178 = pneg %p47
        $region26: #{tpu_custom_call.1} parent=23 // pred_check_branch
          %180 = sbr.rel (%p178) target = $region28
        $region27: #{tpu_custom_call.1} parent=23 // pred_region
          %s181 = sand.u32 %s37, 1
          %s182 = sand.u32 %s37, 1
          %s183 = smul.addr %s182, 8
          %s184 = scalar_lea.vmem [#allocation2], %s183
          %s185 = smul.addr %s21, 4
          %s186 = sadd.s32 %s20, %s185
          %s187 = smul.addr %s186, 4
          %s188 = scalar_lea.vmem %s0, %s187
          // Predicated region
          $region29: #{tpu_custom_call.1} parent=27 // pred_check
            _
          $region30: #{tpu_custom_call.1} parent=27 // pred_check_branch
            %190 = sbr.rel (0) target = $region32
          $region31: #{tpu_custom_call.1} parent=27 // pred_region
            // Predicated region
            $region33: #{tpu_custom_call.1} parent=31 // pred_check
              _
            $region34: #{tpu_custom_call.1} parent=31 // pred_check_branch
              %192 = sbr.rel target = $region36
            $region35: #{tpu_custom_call.1} parent=31 // pred_region
              // Predicated region
              $region48: #{tpu_custom_call.1} parent=35 // pred_check
                _
              $region49: #{tpu_custom_call.1} parent=35 // pred_check_branch
                %209 = sbr.rel (0) target = $region51
              $region50: #{tpu_custom_call.1} parent=35 // pred_region
                loop: start=0, step=1, limit=1
                $region52: #{tpu_custom_call.1} parent=50 // loop_pre_header
                  _
                $region53: #{tpu_custom_call.1} parent=50 // loop_header
                  %s211 = sphi 0, %s215
                  %p212 = scmp.ge.s32.totalorder %s211, 1
                  %s216 = sphi %s188, %s188
                  %s217 = sphi %s184, %s184
                $region54: #{tpu_custom_call.1} parent=50 // loop_header_branch
                  %214 = sbr.rel (%p212) target = $region58
                $region55: #{tpu_custom_call.1} parent=50 // loop_body
                  _
                $region56: #{tpu_custom_call.1} parent=50 // loop_footer
                  %s215 = sadd.s32 1, %s211
                $region57: #{tpu_custom_call.1} parent=50 // loop_footer_branch
                  %210 = sbr.rel target = $region53
                $region58: #{tpu_custom_call.1} parent=50 // loop_exit
                  _
                loop: start=0, step=1, limit=1
                $region59: #{tpu_custom_call.1} parent=50 // loop_pre_header
                  _
                $region60: #{tpu_custom_call.1} parent=50 // loop_header
                  %s220 = sphi 0, %s224
                  %p221 = scmp.ge.s32.totalorder %s220, 1
                  %s225 = sphi %s188, %s188
                  %s226 = sphi %s184, %s184
                $region61: #{tpu_custom_call.1} parent=50 // loop_header_branch
                  %223 = sbr.rel (%p221) target = $region65
                $region62: #{tpu_custom_call.1} parent=50 // loop_body
                  %v227 = vld [vmem:[%s225] sm:$0xf]
                  %228 = vst [vmem:[%s226] sm:$0xf] %v227
                  %v229 = vld [vmem:[%s225 + $0x8] sm:$0xf]
                  %230 = vst [vmem:[%s226 + $0x4] sm:$0xf] %v229
                $region63: #{tpu_custom_call.1} parent=50 // loop_footer
                  %s224 = sadd.s32 1, %s220
                $region64: #{tpu_custom_call.1} parent=50 // loop_footer_branch
                  %219 = sbr.rel target = $region60
                $region65: #{tpu_custom_call.1} parent=50 // loop_exit
                  _
              $region51: #{tpu_custom_call.1} parent=35 // pred_fallthru
                _
            $region36: #{tpu_custom_call.1} parent=31 // pred_fallthru
              _
            // Predicated region
            $region37: #{tpu_custom_call.1} parent=31 // pred_check
              _
            $region38: #{tpu_custom_call.1} parent=31 // pred_check_branch
              %194 = sbr.rel (0) target = $region40
            $region39: #{tpu_custom_call.1} parent=31 // pred_region
              loop: start=0, step=1, limit=1
              $region41: #{tpu_custom_call.1} parent=39 // loop_pre_header
                _
              $region42: #{tpu_custom_call.1} parent=39 // loop_header
                %s197 = sphi 0, %s201
                %p198 = scmp.ge.s32.totalorder %s197, 1
                %s202 = sphi %s188, %s188
                %s203 = sphi %s184, %s184
              $region43: #{tpu_custom_call.1} parent=39 // loop_header_branch
                %200 = sbr.rel (%p198) target = $region47
              $region44: #{tpu_custom_call.1} parent=39 // loop_body
                %v204 = vld [vmem:[%s202] sm:$0xf]
                %205 = vst [vmem:[%s203] sm:$0xf] %v204
                %v206 = vld [vmem:[%s202 + $0x8] sm:$0xf]
                %207 = vst [vmem:[%s203 + $0x4] sm:$0xf] %v206
              $region45: #{tpu_custom_call.1} parent=39 // loop_footer
                %s201 = sadd.s32 1, %s197
              $region46: #{tpu_custom_call.1} parent=39 // loop_footer_branch
                %196 = sbr.rel target = $region42
              $region47: #{tpu_custom_call.1} parent=39 // loop_exit
                _
            $region40: #{tpu_custom_call.1} parent=31 // pred_fallthru
              _
          $region32: #{tpu_custom_call.1} parent=27 // pred_fallthru
            _
          %231 = vnop
        $region28: #{tpu_custom_call.1} parent=23 // pred_fallthru
          _
        // Predicated region
        $region66: #{tpu_custom_call.1} parent=23 // pred_check
          %p232 = pneg %p77
        $region67: #{tpu_custom_call.1} parent=23 // pred_check_branch
          %234 = sbr.rel (%p232) target = $region69
        $region68: #{tpu_custom_call.1} parent=23 // pred_region
          %s235 = sand.u32 %s67, 1
          %s236 = sand.u32 %s67, 1
          %s237 = smul.addr %s236, 8
          %s238 = scalar_lea.vmem [#allocation3], %s237
          %s239 = sadd.s32 %s20, 1
          %s240 = smul.addr %s21, 4
          %s241 = sadd.s32 %s239, %s240
          %s242 = smul.addr %s241, 4
          %s243 = scalar_lea.vmem %s1, %s242
          // Predicated region
          $region70: #{tpu_custom_call.1} parent=68 // pred_check
            _
          $region71: #{tpu_custom_call.1} parent=68 // pred_check_branch
            %245 = sbr.rel (0) target = $region73
          $region72: #{tpu_custom_call.1} parent=68 // pred_region
            // Predicated region
            $region74: #{tpu_custom_call.1} parent=72 // pred_check
              _
            $region75: #{tpu_custom_call.1} parent=72 // pred_check_branch
              %247 = sbr.rel target = $region77
            $region76: #{tpu_custom_call.1} parent=72 // pred_region
              // Predicated region
              $region89: #{tpu_custom_call.1} parent=76 // pred_check
                _
              $region90: #{tpu_custom_call.1} parent=76 // pred_check_branch
                %264 = sbr.rel (0) target = $region92
              $region91: #{tpu_custom_call.1} parent=76 // pred_region
                loop: start=0, step=1, limit=1
                $region93: #{tpu_custom_call.1} parent=91 // loop_pre_header
                  _
                $region94: #{tpu_custom_call.1} parent=91 // loop_header
                  %s266 = sphi 0, %s270
                  %p267 = scmp.ge.s32.totalorder %s266, 1
                  %s271 = sphi %s243, %s243
                  %s272 = sphi %s238, %s238
                $region95: #{tpu_custom_call.1} parent=91 // loop_header_branch
                  %269 = sbr.rel (%p267) target = $region99
                $region96: #{tpu_custom_call.1} parent=91 // loop_body
                  _
                $region97: #{tpu_custom_call.1} parent=91 // loop_footer
                  %s270 = sadd.s32 1, %s266
                $region98: #{tpu_custom_call.1} parent=91 // loop_footer_branch
                  %265 = sbr.rel target = $region94
                $region99: #{tpu_custom_call.1} parent=91 // loop_exit
                  _
                loop: start=0, step=1, limit=1
                $region100: #{tpu_custom_call.1} parent=91 // loop_pre_header
                  _
                $region101: #{tpu_custom_call.1} parent=91 // loop_header
                  %s275 = sphi 0, %s279
                  %p276 = scmp.ge.s32.totalorder %s275, 1
                  %s280 = sphi %s243, %s243
                  %s281 = sphi %s238, %s238
                $region102: #{tpu_custom_call.1} parent=91 // loop_header_branch
                  %278 = sbr.rel (%p276) target = $region106
                $region103: #{tpu_custom_call.1} parent=91 // loop_body
                  %v282 = vld [vmem:[%s280] sm:$0xf]
                  %283 = vst [vmem:[%s281] sm:$0xf] %v282
                  %v284 = vld [vmem:[%s280 + $0x8] sm:$0xf]
                  %285 = vst [vmem:[%s281 + $0x4] sm:$0xf] %v284
                $region104: #{tpu_custom_call.1} parent=91 // loop_footer
                  %s279 = sadd.s32 1, %s275
                $region105: #{tpu_custom_call.1} parent=91 // loop_footer_branch
                  %274 = sbr.rel target = $region101
                $region106: #{tpu_custom_call.1} parent=91 // loop_exit
                  _
              $region92: #{tpu_custom_call.1} parent=76 // pred_fallthru
                _
            $region77: #{tpu_custom_call.1} parent=72 // pred_fallthru
              _
            // Predicated region
            $region78: #{tpu_custom_call.1} parent=72 // pred_check
              _
            $region79: #{tpu_custom_call.1} parent=72 // pred_check_branch
              %249 = sbr.rel (0) target = $region81
            $region80: #{tpu_custom_call.1} parent=72 // pred_region
              loop: start=0, step=1, limit=1
              $region82: #{tpu_custom_call.1} parent=80 // loop_pre_header
                _
              $region83: #{tpu_custom_call.1} parent=80 // loop_header
                %s252 = sphi 0, %s256
                %p253 = scmp.ge.s32.totalorder %s252, 1
                %s257 = sphi %s243, %s243
                %s258 = sphi %s238, %s238
              $region84: #{tpu_custom_call.1} parent=80 // loop_header_branch
                %255 = sbr.rel (%p253) target = $region88
              $region85: #{tpu_custom_call.1} parent=80 // loop_body
                %v259 = vld [vmem:[%s257] sm:$0xf]
                %260 = vst [vmem:[%s258] sm:$0xf] %v259
                %v261 = vld [vmem:[%s257 + $0x8] sm:$0xf]
                %262 = vst [vmem:[%s258 + $0x4] sm:$0xf] %v261
              $region86: #{tpu_custom_call.1} parent=80 // loop_footer
                %s256 = sadd.s32 1, %s252
              $region87: #{tpu_custom_call.1} parent=80 // loop_footer_branch
                %251 = sbr.rel target = $region83
              $region88: #{tpu_custom_call.1} parent=80 // loop_exit
                _
            $region81: #{tpu_custom_call.1} parent=72 // pred_fallthru
              _
          $region73: #{tpu_custom_call.1} parent=68 // pred_fallthru
            _
          %286 = vnop
        $region69: #{tpu_custom_call.1} parent=23 // pred_fallthru
          _
      $region24: #{tpu_custom_call.1} parent=5 // pred_fallthru
        _
      %p287 = scmp.le.s32.totalorder 1, %s13
      %p288 = scmp.lt.s32.totalorder %s13, 3
      %p289 = pnand %p287, %p288
      %p290 = pneg %p289
      // Predicated region
      $region107: #{tpu_custom_call.1} parent=5 // pred_check
        _
      $region108: #{tpu_custom_call.1} parent=5 // pred_check_branch
        %292 = sbr.rel (%p289) target = $region110
      $region109: #{tpu_custom_call.1} parent=5 // pred_region
        %s293 = ssub.s32 %s13, 1
        %s294 = sand.u32 %s40, 1
        %s295 = sand.u32 %s40, 1
        %s296 = smul.addr %s295, 8
        %s297 = scalar_lea.vmem [#allocation2], %s296
        // Predicated region
        $region111: #{tpu_custom_call.1} parent=109 // pred_check
          %p298 = pneg %p53
        $region112: #{tpu_custom_call.1} parent=109 // pred_check_branch
          %300 = sbr.rel (%p298) target = $region114
        $region113: #{tpu_custom_call.1} parent=109 // pred_region
          _
        $region114: #{tpu_custom_call.1} parent=109 // pred_fallthru
          _
        %s301 = sand.u32 %s70, 1
        %s302 = sand.u32 %s70, 1
        %s303 = smul.addr %s302, 8
        %s304 = scalar_lea.vmem [#allocation3], %s303
        // Predicated region
        $region115: #{tpu_custom_call.1} parent=109 // pred_check
          %p305 = pneg %p83
        $region116: #{tpu_custom_call.1} parent=109 // pred_check_branch
          %307 = sbr.rel (%p305) target = $region118
        $region117: #{tpu_custom_call.1} parent=109 // pred_region
          _
        $region118: #{tpu_custom_call.1} parent=109 // pred_fallthru
          _
        %s308 = sand.u32 %s40, 1
        %s309 = sand.u32 %s40, 1
        %s310 = smul.addr %s309, 8
        %s311 = scalar_lea.vmem [#allocation2], %s310
        %p312 = pneg %p53
        %p313 = pneg %p50
        %s314 = sand.u32 %s70, 1
        %s315 = sand.u32 %s70, 1
        %s316 = smul.addr %s315, 8
        %s317 = scalar_lea.vmem [#allocation3], %s316
        %p318 = pneg %p83
        %p319 = pneg %p80
        %p320 = pneg %p104
        %p321 = pneg %p101
        %p322 = pneg %p125
        %p323 = pneg %p122
        %p324 = pneg %p153
        %p325 = pneg %p150
        %s326 = sand.u32 %s140, 1
        %s327 = scalar_lea.sflag [#allocation5], %s326
        %s328 = sand.u32 %s140, 1
        %s329 = smul.addr %s328, 16
        %s330 = scalar_lea.vmem [#allocation4], %s329
        %s331 = sadd.s32 %s22, 1
        %v333 = vld [vmem:[%s297] sm:$0xf]
        %v334 = vld [vmem:[%s297 + $0x4] sm:$0xf]
        %v335 = vld [vmem:[%s304] sm:$0xf]
        %v336 = vld [vmem:[%s304 + $0x4] sm:$0xf]
        %v339 = vunpack.c.l.b16 %v333
        %v340 = vunpack.c.l.b16 %v334
        %v341 = vpack.c.b16 %v340, %v339
        %v344 = vunpack.c.l.b16 %v335
        %v345 = vunpack.c.l.b16 %v336
        %v346 = vpack.c.b16 %v345, %v344
        %v347 = vld [vmem:[%s2] sm:$0xf]
        %v348 = vld [vmem:[%s2 + $0x4] sm:$0xf]
        %s349 = scalar_lea.vmem %s2, 8
        %v350 = vld [vmem:[%s349] sm:$0xf]
        %v351 = vld [vmem:[%s349 + $0x4] sm:$0xf]
        %v354 = vunpack.c.l.b16 %v350
        %v355 = vunpack.c.l.b16 %v351
        %v356 = vpack.c.b16 %v355, %v354
        %v357 = vrot.slane %v341, 2
        %vm358 = vcmask 31744
        %v360 = vsel %vm358, %v356, 0
        %vm362 = vcmask 1041408
        %v364 = vsel %vm362, %v357, 0
        %366 = vmatprep.subr.bf16.mxu0 0
        %367 = vmatpush1.bf16.msra.mxu0 %v364
        %368 = vmatprep.subr.bf16.mxu0 0
        %369 = vmatpush1.bf16.msra.mxu0 0
        %370 = vmatprep.subr.bf16.mxu0 0
        %371 = vmatpush1.bf16.msra.mxu0 0
        %372 = vmatprep.subr.bf16.mxu0 0
        %373 = vmatpush1.bf16.msra.mxu0 0
        %374 = vmatprep.subr.bf16.mxu0 0
        %375 = vmatpush1.bf16.msra.mxu0 0
        %376 = vmatprep.subr.bf16.mxu0 0
        %377 = vmatpush1.bf16.msra.mxu0 0
        %378 = vmatprep.subr.bf16.mxu0 0
        %379 = vmatpush1.bf16.msra.mxu0 0
        %380 = vmatprep.subr.bf16.mxu0 0
        %381 = vmatpush1.bf16.msra.mxu0 0
        %382 = vmatprep.subr.bf16.mxu0 0
        %383 = vmatpush1.bf16.msra.mxu0 0
        %384 = vmatprep.subr.bf16.mxu0 0
        %385 = vmatpush1.bf16.msra.mxu0 0
        %386 = vmatprep.subr.bf16.mxu0 0
        %387 = vmatpush1.bf16.msra.mxu0 0
        %388 = vmatprep.subr.bf16.mxu0 0
        %389 = vmatpush1.bf16.msra.mxu0 0
        %390 = vmatprep.subr.bf16.mxu0 0
        %391 = vmatpush1.bf16.msra.mxu0 0
        %392 = vmatprep.subr.bf16.mxu0 0
        %393 = vmatpush1.bf16.msra.mxu0 0
        %394 = vmatprep.subr.bf16.mxu0 0
        %395 = vmatpush1.bf16.msra.mxu0 0
        %396 = vmatprep.subr.bf16.mxu0 0
        %397 = vmatpush1.bf16.msra.mxu0 0
        %398 = vmatprep.mubr.bf16.mxu0 0
        %399 = vmatmul.mubr.bf16.gmra.mrb[0].mxu0 %v360
        %v400 = vpop.f32.mrb[0].mxu0
        %v401 = vadd.f32 0.0, %v400
        %v402 = vpop.f32.mrb[0].mxu0
        %v403 = vpop.f32.mrb[0].mxu0
        %v404 = vadd.f32 0.0, %v403
        %v405 = vpop.f32.mrb[0].mxu0
        %406 = vdwg.mxu0
        %v409 = vunpack.c.l.b16 %v347
        %v410 = vunpack.c.l.b16 %v348
        %v411 = vpack.c.b16 %v410, %v409
        %v413 = vsel %vm358, %v411, 0
        %v416 = vsel %vm362, %v341, 0
        %418 = vmatprep.subr.bf16.mxu0 0
        %419 = vmatpush1.bf16.msra.mxu0 %v416
        %420 = vmatprep.subr.bf16.mxu0 0
        %421 = vmatpush1.bf16.msra.mxu0 0
        %422 = vmatprep.subr.bf16.mxu0 0
        %423 = vmatpush1.bf16.msra.mxu0 0
        %424 = vmatprep.subr.bf16.mxu0 0
        %425 = vmatpush1.bf16.msra.mxu0 0
        %426 = vmatprep.subr.bf16.mxu0 0
        %427 = vmatpush1.bf16.msra.mxu0 0
        %428 = vmatprep.subr.bf16.mxu0 0
        %429 = vmatpush1.bf16.msra.mxu0 0
        %430 = vmatprep.subr.bf16.mxu0 0
        %431 = vmatpush1.bf16.msra.mxu0 0
        %432 = vmatprep.subr.bf16.mxu0 0
        %433 = vmatpush1.bf16.msra.mxu0 0
        %434 = vmatprep.subr.bf16.mxu0 0
        %435 = vmatpush1.bf16.msra.mxu0 0
        %436 = vmatprep.subr.bf16.mxu0 0
        %437 = vmatpush1.bf16.msra.mxu0 0
        %438 = vmatprep.subr.bf16.mxu0 0
        %439 = vmatpush1.bf16.msra.mxu0 0
        %440 = vmatprep.subr.bf16.mxu0 0
        %441 = vmatpush1.bf16.msra.mxu0 0
        %442 = vmatprep.subr.bf16.mxu0 0
        %443 = vmatpush1.bf16.msra.mxu0 0
        %444 = vmatprep.subr.bf16.mxu0 0
        %445 = vmatpush1.bf16.msra.mxu0 0
        %446 = vmatprep.subr.bf16.mxu0 0
        %447 = vmatpush1.bf16.msra.mxu0 0
        %448 = vmatprep.subr.bf16.mxu0 0
        %449 = vmatpush1.bf16.msra.mxu0 0
        %450 = vmatprep.mubr.bf16.mxu0 0
        %451 = vmatmul.mubr.bf16.gmra.mrb[0].mxu0 %v413
        %v452 = vpop.f32.mrb[0].mxu0
        %v453 = vadd.f32 %v401, %v452
        %v454 = vpop.f32.mrb[0].mxu0
        %v455 = vpop.f32.mrb[0].mxu0
        %v456 = vadd.f32 %v404, %v455
        %v457 = vpop.f32.mrb[0].mxu0
        %458 = vdwg.mxu0
        %s459 = scalar_lea.vmem %s2, 16
        %v460 = vld [vmem:[%s459] sm:$0xf]
        %v461 = vld [vmem:[%s459 + $0x4] sm:$0xf]
        %v464 = vunpack.c.l.b16 %v460
        %v465 = vunpack.c.l.b16 %v461
        %v466 = vpack.c.b16 %v465, %v464
        %467 = vrot.lane.b32.xlu0 %v341, 127
        %v468 = vpop.permute.xlu0 %467
        %469 = vrot.lane.b32.xlu0 %v346, 127
        %v470 = vpop.permute.xlu0 %469
        %vm471 = vcmask 1039360
        %v472 = vsel %vm471, %v468, %v470
        %v474 = vsel %vm358, %v466, 0
        %v477 = vsel %vm362, %v472, 0
        %479 = vmatprep.subr.bf16.mxu0 0
        %480 = vmatpush1.bf16.msra.mxu0 %v477
        %481 = vmatprep.subr.bf16.mxu0 0
        %482 = vmatpush1.bf16.msra.mxu0 0
        %483 = vmatprep.subr.bf16.mxu0 0
        %484 = vmatpush1.bf16.msra.mxu0 0
        %485 = vmatprep.subr.bf16.mxu0 0
        %486 = vmatpush1.bf16.msra.mxu0 0
        %487 = vmatprep.subr.bf16.mxu0 0
        %488 = vmatpush1.bf16.msra.mxu0 0
        %489 = vmatprep.subr.bf16.mxu0 0
        %490 = vmatpush1.bf16.msra.mxu0 0
        %491 = vmatprep.subr.bf16.mxu0 0
        %492 = vmatpush1.bf16.msra.mxu0 0
        %493 = vmatprep.subr.bf16.mxu0 0
        %494 = vmatpush1.bf16.msra.mxu0 0
        %495 = vmatprep.subr.bf16.mxu0 0
        %496 = vmatpush1.bf16.msra.mxu0 0
        %497 = vmatprep.subr.bf16.mxu0 0
        %498 = vmatpush1.bf16.msra.mxu0 0
        %499 = vmatprep.subr.bf16.mxu0 0
        %500 = vmatpush1.bf16.msra.mxu0 0
        %501 = vmatprep.subr.bf16.mxu0 0
        %502 = vmatpush1.bf16.msra.mxu0 0
        %503 = vmatprep.subr.bf16.mxu0 0
        %504 = vmatpush1.bf16.msra.mxu0 0
        %505 = vmatprep.subr.bf16.mxu0 0
        %506 = vmatpush1.bf16.msra.mxu0 0
        %507 = vmatprep.subr.bf16.mxu0 0
        %508 = vmatpush1.bf16.msra.mxu0 0
        %509 = vmatprep.subr.bf16.mxu0 0
        %510 = vmatpush1.bf16.msra.mxu0 0
        %511 = vmatprep.mubr.bf16.mxu0 0
        %512 = vmatmul.mubr.bf16.gmra.mrb[0].mxu0 %v474
        %v513 = vpop.f32.mrb[0].mxu0
        %v514 = vadd.f32 0.0, %v513
        %v515 = vpop.f32.mrb[0].mxu0
        %v516 = vpop.f32.mrb[0].mxu0
        %v517 = vadd.f32 0.0, %v516
        %v518 = vpop.f32.mrb[0].mxu0
        %519 = vdwg.mxu0
        %v520 = vadd.f32 %v453, %v514
        %v521 = vadd.f32 %v456, %v517
        %s522 = scalar_lea.vmem %s2, 24
        %v523 = vld [vmem:[%s522] sm:$0xf]
        %v524 = vld [vmem:[%s522 + $0x4] sm:$0xf]
        %v527 = vunpack.c.l.b16 %v523
        %v528 = vunpack.c.l.b16 %v524
        %v529 = vpack.c.b16 %v528, %v527
        %v530 = vrot.slane %v341, 4
        %v532 = vsel %vm358, %v529, 0
        %v535 = vsel %vm362, %v530, 0
        %537 = vmatprep.subr.bf16.mxu0 0
        %538 = vmatpush1.bf16.msra.mxu0 %v535
        %539 = vmatprep.subr.bf16.mxu0 0
        %540 = vmatpush1.bf16.msra.mxu0 0
        %541 = vmatprep.subr.bf16.mxu0 0
        %542 = vmatpush1.bf16.msra.mxu0 0
        %543 = vmatprep.subr.bf16.mxu0 0
        %544 = vmatpush1.bf16.msra.mxu0 0
        %545 = vmatprep.subr.bf16.mxu0 0
        %546 = vmatpush1.bf16.msra.mxu0 0
        %547 = vmatprep.subr.bf16.mxu0 0
        %548 = vmatpush1.bf16.msra.mxu0 0
        %549 = vmatprep.subr.bf16.mxu0 0
        %550 = vmatpush1.bf16.msra.mxu0 0
        %551 = vmatprep.subr.bf16.mxu0 0
        %552 = vmatpush1.bf16.msra.mxu0 0
        %553 = vmatprep.subr.bf16.mxu0 0
        %554 = vmatpush1.bf16.msra.mxu0 0
        %555 = vmatprep.subr.bf16.mxu0 0
        %556 = vmatpush1.bf16.msra.mxu0 0
        %557 = vmatprep.subr.bf16.mxu0 0
        %558 = vmatpush1.bf16.msra.mxu0 0
        %559 = vmatprep.subr.bf16.mxu0 0
        %560 = vmatpush1.bf16.msra.mxu0 0
        %561 = vmatprep.subr.bf16.mxu0 0
        %562 = vmatpush1.bf16.msra.mxu0 0
        %563 = vmatprep.subr.bf16.mxu0 0
        %564 = vmatpush1.bf16.msra.mxu0 0
        %565 = vmatprep.subr.bf16.mxu0 0
        %566 = vmatpush1.bf16.msra.mxu0 0
        %567 = vmatprep.subr.bf16.mxu0 0
        %568 = vmatpush1.bf16.msra.mxu0 0
        %569 = vmatprep.mubr.bf16.mxu0 0
        %570 = vmatmul.mubr.bf16.gmra.mrb[0].mxu0 %v532
        %v571 = vpop.f32.mrb[0].mxu0
        %v572 = vadd.f32 0.0, %v571
        %v573 = vpop.f32.mrb[0].mxu0
        %v574 = vpop.f32.mrb[0].mxu0
        %v575 = vadd.f32 0.0, %v574
        %v576 = vpop.f32.mrb[0].mxu0
        %577 = vdwg.mxu0
        %v578 = vadd.f32 %v520, %v572
        %v579 = vadd.f32 %v521, %v575
        %s580 = scalar_lea.vmem %s2, 32
        %v581 = vld [vmem:[%s580] sm:$0xf]
        %v582 = vld [vmem:[%s580 + $0x4] sm:$0xf]
        %v585 = vunpack.c.l.b16 %v581
        %v586 = vunpack.c.l.b16 %v582
        %v587 = vpack.c.b16 %v586, %v585
        %v588 = vrot.slane %v341, 6
        %v590 = vsel %vm358, %v587, 0
        %v593 = vsel %vm362, %v588, 0
        %595 = vmatprep.subr.bf16.mxu0 0
        %596 = vmatpush1.bf16.msra.mxu0 %v593
        %597 = vmatprep.subr.bf16.mxu0 0
        %598 = vmatpush1.bf16.msra.mxu0 0
        %599 = vmatprep.subr.bf16.mxu0 0
        %600 = vmatpush1.bf16.msra.mxu0 0
        %601 = vmatprep.subr.bf16.mxu0 0
        %602 = vmatpush1.bf16.msra.mxu0 0
        %603 = vmatprep.subr.bf16.mxu0 0
        %604 = vmatpush1.bf16.msra.mxu0 0
        %605 = vmatprep.subr.bf16.mxu0 0
        %606 = vmatpush1.bf16.msra.mxu0 0
        %607 = vmatprep.subr.bf16.mxu0 0
        %608 = vmatpush1.bf16.msra.mxu0 0
        %609 = vmatprep.subr.bf16.mxu0 0
        %610 = vmatpush1.bf16.msra.mxu0 0
        %611 = vmatprep.subr.bf16.mxu0 0
        %612 = vmatpush1.bf16.msra.mxu0 0
        %613 = vmatprep.subr.bf16.mxu0 0
        %614 = vmatpush1.bf16.msra.mxu0 0
        %615 = vmatprep.subr.bf16.mxu0 0
        %616 = vmatpush1.bf16.msra.mxu0 0
        %617 = vmatprep.subr.bf16.mxu0 0
        %618 = vmatpush1.bf16.msra.mxu0 0
        %619 = vmatprep.subr.bf16.mxu0 0
        %620 = vmatpush1.bf16.msra.mxu0 0
        %621 = vmatprep.subr.bf16.mxu0 0
        %622 = vmatpush1.bf16.msra.mxu0 0
        %623 = vmatprep.subr.bf16.mxu0 0
        %624 = vmatpush1.bf16.msra.mxu0 0
        %625 = vmatprep.subr.bf16.mxu0 0
        %626 = vmatpush1.bf16.msra.mxu0 0
        %627 = vmatprep.mubr.bf16.mxu0 0
        %628 = vmatmul.mubr.bf16.gmra.mrb[0].mxu0 %v590
        %v629 = vpop.f32.mrb[0].mxu0
        %v630 = vadd.f32 0.0, %v629
        %v631 = vpop.f32.mrb[0].mxu0
        %v632 = vpop.f32.mrb[0].mxu0
        %v633 = vadd.f32 0.0, %v632
        %v634 = vpop.f32.mrb[0].mxu0
        %635 = vdwg.mxu0
        %v636 = vadd.f32 %v578, %v630
        %v637 = vadd.f32 %v579, %v633
        %s638 = scalar_lea.vmem %s2, 40
        %v639 = vld [vmem:[%s638] sm:$0xf]
        %v640 = vld [vmem:[%s638 + $0x4] sm:$0xf]
        %v643 = vunpack.c.l.b16 %v639
        %v644 = vunpack.c.l.b16 %v640
        %v645 = vpack.c.b16 %v644, %v643
        %v646 = vrot.slane %v346, 4
        %647 = vrot.lane.b32.xlu0 %v530, 127
        %v648 = vpop.permute.xlu0 %647
        %649 = vrot.lane.b32.xlu0 %v646, 127
        %v650 = vpop.permute.xlu0 %649
        %v651 = vsel %vm471, %v648, %v650
        %v653 = vsel %vm358, %v645, 0
        %v656 = vsel %vm362, %v651, 0
        %658 = vmatprep.subr.bf16.mxu0 0
        %659 = vmatpush1.bf16.msra.mxu0 %v656
        %660 = vmatprep.subr.bf16.mxu0 0
        %661 = vmatpush1.bf16.msra.mxu0 0
        %662 = vmatprep.subr.bf16.mxu0 0
        %663 = vmatpush1.bf16.msra.mxu0 0
        %664 = vmatprep.subr.bf16.mxu0 0
        %665 = vmatpush1.bf16.msra.mxu0 0
        %666 = vmatprep.subr.bf16.mxu0 0
        %667 = vmatpush1.bf16.msra.mxu0 0
        %668 = vmatprep.subr.bf16.mxu0 0
        %669 = vmatpush1.bf16.msra.mxu0 0
        %670 = vmatprep.subr.bf16.mxu0 0
        %671 = vmatpush1.bf16.msra.mxu0 0
        %672 = vmatprep.subr.bf16.mxu0 0
        %673 = vmatpush1.bf16.msra.mxu0 0
        %674 = vmatprep.subr.bf16.mxu0 0
        %675 = vmatpush1.bf16.msra.mxu0 0
        %676 = vmatprep.subr.bf16.mxu0 0
        %677 = vmatpush1.bf16.msra.mxu0 0
        %678 = vmatprep.subr.bf16.mxu0 0
        %679 = vmatpush1.bf16.msra.mxu0 0
        %680 = vmatprep.subr.bf16.mxu0 0
        %681 = vmatpush1.bf16.msra.mxu0 0
        %682 = vmatprep.subr.bf16.mxu0 0
        %683 = vmatpush1.bf16.msra.mxu0 0
        %684 = vmatprep.subr.bf16.mxu0 0
        %685 = vmatpush1.bf16.msra.mxu0 0
        %686 = vmatprep.subr.bf16.mxu0 0
        %687 = vmatpush1.bf16.msra.mxu0 0
        %688 = vmatprep.subr.bf16.mxu0 0
        %689 = vmatpush1.bf16.msra.mxu0 0
        %690 = vmatprep.mubr.bf16.mxu0 0
        %691 = vmatmul.mubr.bf16.gmra.mrb[0].mxu0 %v653
        %v692 = vpop.f32.mrb[0].mxu0
        %v693 = vadd.f32 0.0, %v692
        %v694 = vpop.f32.mrb[0].mxu0
        %v695 = vpop.f32.mrb[0].mxu0
        %v696 = vadd.f32 0.0, %v695
        %v697 = vpop.f32.mrb[0].mxu0
        %698 = vdwg.mxu0
        %v699 = vadd.f32 %v636, %v693
        %v700 = vadd.f32 %v637, %v696
        %s701 = scalar_lea.vmem %s2, 48
        %v702 = vld [vmem:[%s701] sm:$0xf]
        %v703 = vld [vmem:[%s701 + $0x4] sm:$0xf]
        %v706 = vunpack.c.l.b16 %v702
        %v707 = vunpack.c.l.b16 %v703
        %v708 = vpack.c.b16 %v707, %v706
        %709 = vrot.lane.b32.xlu0 %v341, 112
        %v710 = vpop.permute.xlu0 %709
        %711 = vrot.lane.b32.xlu0 %v346, 112
        %v712 = vpop.permute.xlu0 %711
        %vm713 = vcmask 916480
        %v714 = vsel %vm713, %v710, %v712
        %v716 = vsel %vm358, %v708, 0
        %v719 = vsel %vm362, %v714, 0
        %721 = vmatprep.subr.bf16.mxu0 0
        %722 = vmatpush1.bf16.msra.mxu0 %v719
        %723 = vmatprep.subr.bf16.mxu0 0
        %724 = vmatpush1.bf16.msra.mxu0 0
        %725 = vmatprep.subr.bf16.mxu0 0
        %726 = vmatpush1.bf16.msra.mxu0 0
        %727 = vmatprep.subr.bf16.mxu0 0
        %728 = vmatpush1.bf16.msra.mxu0 0
        %729 = vmatprep.subr.bf16.mxu0 0
        %730 = vmatpush1.bf16.msra.mxu0 0
        %731 = vmatprep.subr.bf16.mxu0 0
        %732 = vmatpush1.bf16.msra.mxu0 0
        %733 = vmatprep.subr.bf16.mxu0 0
        %734 = vmatpush1.bf16.msra.mxu0 0
        %735 = vmatprep.subr.bf16.mxu0 0
        %736 = vmatpush1.bf16.msra.mxu0 0
        %737 = vmatprep.subr.bf16.mxu0 0
        %738 = vmatpush1.bf16.msra.mxu0 0
        %739 = vmatprep.subr.bf16.mxu0 0
        %740 = vmatpush1.bf16.msra.mxu0 0
        %741 = vmatprep.subr.bf16.mxu0 0
        %742 = vmatpush1.bf16.msra.mxu0 0
        %743 = vmatprep.subr.bf16.mxu0 0
        %744 = vmatpush1.bf16.msra.mxu0 0
        %745 = vmatprep.subr.bf16.mxu0 0
        %746 = vmatpush1.bf16.msra.mxu0 0
        %747 = vmatprep.subr.bf16.mxu0 0
        %748 = vmatpush1.bf16.msra.mxu0 0
        %749 = vmatprep.subr.bf16.mxu0 0
        %750 = vmatpush1.bf16.msra.mxu0 0
        %751 = vmatprep.subr.bf16.mxu0 0
        %752 = vmatpush1.bf16.msra.mxu0 0
        %753 = vmatprep.mubr.bf16.mxu0 0
        %754 = vmatmul.mubr.bf16.gmra.mrb[0].mxu0 %v716
        %v755 = vpop.f32.mrb[0].mxu0
        %v756 = vadd.f32 0.0, %v755
        %v757 = vpop.f32.mrb[0].mxu0
        %v758 = vpop.f32.mrb[0].mxu0
        %v759 = vadd.f32 0.0, %v758
        %v760 = vpop.f32.mrb[0].mxu0
        %761 = vdwg.mxu0
        %v762 = vadd.f32 %v699, %v756
        %v763 = vadd.f32 %v700, %v759
        %s764 = scalar_lea.vmem %s2, 56
        %v765 = vld [vmem:[%s764] sm:$0xf]
        %v766 = vld [vmem:[%s764 + $0x4] sm:$0xf]
        %v769 = vunpack.c.l.b16 %v765
        %v770 = vunpack.c.l.b16 %v766
        %v771 = vpack.c.b16 %v770, %v769
        %v772 = vrot.slane %v346, 2
        %773 = vrot.lane.b32.xlu0 %v357, 112
        %v774 = vpop.permute.xlu0 %773
        %775 = vrot.lane.b32.xlu0 %v772, 112
        %v776 = vpop.permute.xlu0 %775
        %v777 = vsel %vm713, %v774, %v776
        %v779 = vsel %vm358, %v771, 0
        %v782 = vsel %vm362, %v777, 0
        %784 = vmatprep.subr.bf16.mxu0 0
        %785 = vmatpush1.bf16.msra.mxu0 %v782
        %786 = vmatprep.subr.bf16.mxu0 0
        %787 = vmatpush1.bf16.msra.mxu0 0
        %788 = vmatprep.subr.bf16.mxu0 0
        %789 = vmatpush1.bf16.msra.mxu0 0
        %790 = vmatprep.subr.bf16.mxu0 0
        %791 = vmatpush1.bf16.msra.mxu0 0
        %792 = vmatprep.subr.bf16.mxu0 0
        %793 = vmatpush1.bf16.msra.mxu0 0
        %794 = vmatprep.subr.bf16.mxu0 0
        %795 = vmatpush1.bf16.msra.mxu0 0
        %796 = vmatprep.subr.bf16.mxu0 0
        %797 = vmatpush1.bf16.msra.mxu0 0
        %798 = vmatprep.subr.bf16.mxu0 0
        %799 = vmatpush1.bf16.msra.mxu0 0
        %800 = vmatprep.subr.bf16.mxu0 0
        %801 = vmatpush1.bf16.msra.mxu0 0
        %802 = vmatprep.subr.bf16.mxu0 0
        %803 = vmatpush1.bf16.msra.mxu0 0
        %804 = vmatprep.subr.bf16.mxu0 0
        %805 = vmatpush1.bf16.msra.mxu0 0
        %806 = vmatprep.subr.bf16.mxu0 0
        %807 = vmatpush1.bf16.msra.mxu0 0
        %808 = vmatprep.subr.bf16.mxu0 0
        %809 = vmatpush1.bf16.msra.mxu0 0
        %810 = vmatprep.subr.bf16.mxu0 0
        %811 = vmatpush1.bf16.msra.mxu0 0
        %812 = vmatprep.subr.bf16.mxu0 0
        %813 = vmatpush1.bf16.msra.mxu0 0
        %814 = vmatprep.subr.bf16.mxu0 0
        %815 = vmatpush1.bf16.msra.mxu0 0
        %816 = vmatprep.mubr.bf16.mxu0 0
        %817 = vmatmul.mubr.bf16.gmra.mrb[0].mxu0 %v779
        %v818 = vpop.f32.mrb[0].mxu0
        %v819 = vadd.f32 0.0, %v818
        %v820 = vpop.f32.mrb[0].mxu0
        %v821 = vpop.f32.mrb[0].mxu0
        %v822 = vadd.f32 0.0, %v821
        %v823 = vpop.f32.mrb[0].mxu0
        %824 = vdwg.mxu0
        %v825 = vadd.f32 %v762, %v819
        %v826 = vadd.f32 %v763, %v822
        %s827 = scalar_lea.vmem %s2, 64
        %v828 = vld [vmem:[%s827] sm:$0xf]
        %v829 = vld [vmem:[%s827 + $0x4] sm:$0xf]
        %v832 = vunpack.c.l.b16 %v828
        %v833 = vunpack.c.l.b16 %v829
        %v834 = vpack.c.b16 %v833, %v832
        %835 = vrot.lane.b32.xlu0 %v341, 111
        %v836 = vpop.permute.xlu0 %835
        %837 = vrot.lane.b32.xlu0 %v346, 111
        %v838 = vpop.permute.xlu0 %837
        %vm839 = vcmask 908288
        %v840 = vsel %vm839, %v836, %v838
        %v842 = vsel %vm358, %v834, 0
        %v845 = vsel %vm362, %v840, 0
        %847 = vmatprep.subr.bf16.mxu0 0
        %848 = vmatpush1.bf16.msra.mxu0 %v845
        %849 = vmatprep.subr.bf16.mxu0 0
        %850 = vmatpush1.bf16.msra.mxu0 0
        %851 = vmatprep.subr.bf16.mxu0 0
        %852 = vmatpush1.bf16.msra.mxu0 0
        %853 = vmatprep.subr.bf16.mxu0 0
        %854 = vmatpush1.bf16.msra.mxu0 0
        %855 = vmatprep.subr.bf16.mxu0 0
        %856 = vmatpush1.bf16.msra.mxu0 0
        %857 = vmatprep.subr.bf16.mxu0 0
        %858 = vmatpush1.bf16.msra.mxu0 0
        %859 = vmatprep.subr.bf16.mxu0 0
        %860 = vmatpush1.bf16.msra.mxu0 0
        %861 = vmatprep.subr.bf16.mxu0 0
        %862 = vmatpush1.bf16.msra.mxu0 0
        %863 = vmatprep.subr.bf16.mxu0 0
        %864 = vmatpush1.bf16.msra.mxu0 0
        %865 = vmatprep.subr.bf16.mxu0 0
        %866 = vmatpush1.bf16.msra.mxu0 0
        %867 = vmatprep.subr.bf16.mxu0 0
        %868 = vmatpush1.bf16.msra.mxu0 0
        %869 = vmatprep.subr.bf16.mxu0 0
        %870 = vmatpush1.bf16.msra.mxu0 0
        %871 = vmatprep.subr.bf16.mxu0 0
        %872 = vmatpush1.bf16.msra.mxu0 0
        %873 = vmatprep.subr.bf16.mxu0 0
        %874 = vmatpush1.bf16.msra.mxu0 0
        %875 = vmatprep.subr.bf16.mxu0 0
        %876 = vmatpush1.bf16.msra.mxu0 0
        %877 = vmatprep.subr.bf16.mxu0 0
        %878 = vmatpush1.bf16.msra.mxu0 0
        %879 = vmatprep.mubr.bf16.mxu0 0
        %880 = vmatmul.mubr.bf16.gmra.mrb[0].mxu0 %v842
        %v881 = vpop.f32.mrb[0].mxu0
        %v882 = vadd.f32 0.0, %v881
        %v883 = vpop.f32.mrb[0].mxu0
        %v884 = vpop.f32.mrb[0].mxu0
        %v885 = vadd.f32 0.0, %v884
        %v886 = vpop.f32.mrb[0].mxu0
        %887 = vdwg.mxu0
        %v888 = vadd.f32 %v825, %v882
        %v889 = vadd.f32 %v826, %v885
        %v890 = vld [vmem:[%s3] sm:$0xff]
        %v891 = vld [vmem:[%s3 + $0x8] sm:$0xff]
        %893 = vset.pattern.permute.xlu0 0
        %894 = vperm.xlu0 %893, %v890
        %v895 = vpop.permute.xlu0 %894
        %898 = vset.pattern.permute.xlu0 0
        %899 = vperm.xlu0 %898, %v891
        %v900 = vpop.permute.xlu0 %899
        %v902 = vadd.f32 %v888, %v895
        %v903 = vadd.f32 %v889, %v900
        %904 = vst [vmem:[%s330] sm:$0xff] %v902
        %905 = vst [vmem:[%s330 + $0x8] sm:$0xff] %v903
        %s906 = sand.u32 %s140, 1
        %s907 = scalar_lea.sflag [#allocation5], %s906
        %s908 = sand.u32 %s140, 1
        %s909 = smul.addr %s908, 16
        %s910 = scalar_lea.vmem [#allocation4], %s909
        // Predicated region
        $region119: #{tpu_custom_call.1} parent=109 // pred_check
          %p911 = pneg %p150
        $region120: #{tpu_custom_call.1} parent=109 // pred_check_branch
          %913 = sbr.rel (%p911) target = $region122
        $region121: #{tpu_custom_call.1} parent=109 // pred_region
          %s915 = ssub.s32 256, 256
          %916 = vsyncadd %s907, %s915
          %s917 = smul.addr %s23, 2
          %s918 = sadd.s32 %s22, %s917
          %s919 = smul.addr %s918, 128
          %s920 = scalar_lea.hbm %s4, %s919
          %s921 = sshll.u32 %s910, 4
          %s922 = int_to_ptr.vmem [resolvable:$true] %s921
          %927 = dma.vmem_to_hbm [thread:$0]  %s922, 256, %s920, %s907, 128, 128, 8
        $region122: #{tpu_custom_call.1} parent=109 // pred_fallthru
          _
      $region110: #{tpu_custom_call.1} parent=5 // pred_fallthru
        _
      %p928 = scmp.le.s32.totalorder 2, %s13
      // Predicated region
      $region123: #{tpu_custom_call.1} parent=5 // pred_check
        %p929 = pneg %p928
      $region124: #{tpu_custom_call.1} parent=5 // pred_check_branch
        %931 = sbr.rel (%p929) target = $region126
      $region125: #{tpu_custom_call.1} parent=5 // pred_region
        %s932 = ssub.s32 %s13, 2
        // Predicated region
        $region127: #{tpu_custom_call.1} parent=125 // pred_check
          %p933 = pneg %p156
        $region128: #{tpu_custom_call.1} parent=125 // pred_check_branch
          %935 = sbr.rel (%p933) target = $region130
        $region129: #{tpu_custom_call.1} parent=125 // pred_region
          %s936 = sand.u32 %s141, 1
          %s937 = scalar_lea.sflag [#allocation5], %s936
          %s938 = sand.u32 %s141, 1
          %s939 = smul.addr %s938, 16
          %s940 = scalar_lea.vmem [#allocation4], %s939
          %941 = dma.done %s937, 256
        $region130: #{tpu_custom_call.1} parent=125 // pred_fallthru
          _
      $region126: #{tpu_custom_call.1} parent=5 // pred_fallthru
        _
    $region6: #{tpu_custom_call.1} parent=1 // loop_footer
      %s17 = sadd.s32 1, %s13
    $region7: #{tpu_custom_call.1} parent=1 // loop_footer_branch
      %12 = sbr.rel target = $region3
    $region8: #{tpu_custom_call.1} parent=1 // loop_exit
      _
    %942 = vsyncpa [#allocation5], 1
    %s943 = scalar_lea.sflag [#allocation5], 1
    %944 = vsyncpa %s943, 1

</llo_original>
